<compile_context>
chip_gen: v5e
topology: v5e:2x2
jax: 0.10.0
libtpu: 0.0.40
codegen_flags: <defaults>
</compile_context>

<pallas_src>
import jax
import jax.numpy as jnp
from jax.experimental import pallas as pl
from jax.experimental.pallas import tpu as pltpu


LANE = 128  # TPU lane width — output-channel padding target.


# ---------------------------------------------------------------------------
# Pallas kernel: gathered-GEMM  out = g @ w2 + bias   (lane-dense K)
# ---------------------------------------------------------------------------
def _subm_gemm_kernel(g_ref, w_ref, b_ref, o_ref):
    # g_ref: (TM, R*S*C)   gathered input features (compute dtype, e.g. bf16)
    # w_ref: (R*S*C, Kp)   reshaped, K-padded conv weight (compute dtype)
    # b_ref: (1, Kp)       K-padded bias (f32)
    # o_ref: (TM, Kp)      output tile (f32)
    acc = jnp.dot(g_ref[...], w_ref[...], preferred_element_type=jnp.float32)
    o_ref[...] = (acc + b_ref[...]).astype(o_ref.dtype)


def _subm_gemm(gathered, w2p, bias2p, *, tm):
    n_pad, rsc = gathered.shape
    kp = w2p.shape[1]
    cost = pl.CostEstimate(
        flops=2 * n_pad * rsc * kp,
        transcendentals=0,
        bytes_accessed=(n_pad * rsc * gathered.dtype.itemsize
                        + rsc * kp * w2p.dtype.itemsize
                        + kp * 4
                        + n_pad * kp * 4),
    )
    return pl.pallas_call(
        _subm_gemm_kernel,
        out_shape=jax.ShapeDtypeStruct((n_pad, kp), jnp.float32),
        grid_spec=pltpu.PrefetchScalarGridSpec(
            num_scalar_prefetch=0,
            grid=(n_pad // tm,),
            in_specs=[
                pl.BlockSpec((tm, rsc), lambda i: (i, 0)),
                pl.BlockSpec((rsc, kp), lambda i: (0, 0)),   # VMEM-resident
                pl.BlockSpec((1, kp), lambda i: (0, 0)),     # VMEM-resident
            ],
            out_specs=pl.BlockSpec((tm, kp), lambda i: (i, 0)),
        ),
        compiler_params=pltpu.CompilerParams(
            dimension_semantics=("parallel",),
            vmem_limit_bytes=32 * 1024 * 1024,
        ),
        cost_estimate=cost,
    )(gathered, w2p, bias2p)


# ---------------------------------------------------------------------------
# naive_submconv2d_1 equivalent (rulebook/gather glue in JAX, GEMM in Pallas)
# ---------------------------------------------------------------------------
def naive_submconv2d_1(features, indices, H, W, batch_size, weight, bias,
                       stride, padding, dilation,
                       compute_dtype=jnp.bfloat16, tm=512):
    K, R, S, C = weight.shape
    str_h, str_w = stride
    pad_h, pad_w = padding
    dil_h, dil_w = dilation
    # standard conv output spatial shape (as in the reference op)
    P = (H + 2 * pad_h - dil_h * (R - 1) - 1) // str_h + 1
    Q = (W + 2 * pad_w - dil_w * (S - 1) - 1) // str_w + 1
    N = features.shape[0]
    RS = R * S

    # rulebook: dense lookup (b, h, w) -> row in `features`, -1 if inactive
    lut = jnp.full((batch_size, H, W), -1, dtype=jnp.int32)
    lut = lut.at[indices[:, 0], indices[:, 1], indices[:, 2]].set(
        jnp.arange(N, dtype=jnp.int32))

    b = indices[:, 0]
    h = indices[:, 1]
    w = indices[:, 2]
    r = jnp.arange(R, dtype=jnp.int32)
    s = jnp.arange(S, dtype=jnp.int32)
    # (N, R, S) input coordinates feeding each (submanifold) output point
    h_in = h[:, None, None] * str_h - pad_h + r[None, :, None] * dil_h
    w_in = w[:, None, None] * str_w - pad_w + s[None, None, :] * dil_w
    valid = (h_in >= 0) & (h_in < H) & (w_in >= 0) & (w_in < W)
    src = lut[b[:, None, None],
              jnp.clip(h_in, 0, H - 1),
              jnp.clip(w_in, 0, W - 1)]
    # row N = all-zero "missing" row
    src = jnp.where(valid & (src >= 0), src, N).reshape(N, RS)

    # point-axis tile: shrink for small N (sublane-aligned), cap at `tm`
    tm_eff = max(8, min(tm, ((N + 7) // 8) * 8))
    n_pad = ((max(N, 1) + tm_eff - 1) // tm_eff) * tm_eff

    # pad along the point axis BEFORE the gather (no post-gather pad copy);
    # padding rows all point at the zero row.
    src = jnp.concatenate(
        [src, jnp.full((n_pad - N, RS), N, dtype=jnp.int32)], axis=0)

    feats0 = jnp.concatenate(
        [features.astype(compute_dtype),
         jnp.zeros((1, C), compute_dtype)], axis=0)
    gathered = feats0[src].reshape(n_pad, RS * C)           # (n_pad, R*S*C)

    # GEMM weight: w2[(r*S+s)*C + c, k] = weight[k, r, s, c], K padded to 128
    k_pad = ((K + LANE - 1) // LANE) * LANE
    w2 = jnp.transpose(weight, (1, 2, 3, 0)).reshape(RS * C, K)
    w2p = jnp.zeros((RS * C, k_pad), compute_dtype).at[:, :K].set(
        w2.astype(compute_dtype))
    if bias is None:
        bias = jnp.zeros((K,), jnp.float32)
    bias2p = jnp.zeros((1, k_pad), jnp.float32).at[0, :K].set(
        bias.astype(jnp.float32))

    out_features = _subm_gemm(gathered, w2p, bias2p, tm=tm_eff)
    out_features = out_features[:N, :K].astype(features.dtype)

    # submanifold conv: output indices == input indices
    return out_features, indices, P, Q


# ---------------------------------------------------------------------------
# Module-equivalent wrapper with deterministic parameter init
# ---------------------------------------------------------------------------
class NaiveSubMConv2dPallas:
    def __init__(self, in_channels, out_channels, kernel_size,
                 stride=1, padding=0, dilation=1, bias=True,
                 dtype=jnp.float32, compute_dtype=jnp.bfloat16, key=None):
        self.C = in_channels
        self.K = out_channels
        self.R, self.S = (kernel_size, kernel_size) if isinstance(
            kernel_size, int) else kernel_size
        self.str_h, self.str_w = (stride, stride) if isinstance(
            stride, int) else stride
        self.pad_h, self.pad_w = (padding, padding) if isinstance(
            padding, int) else padding
        self.dil_h, self.dil_w = (dilation, dilation) if isinstance(
            dilation, int) else dilation
        self.compute_dtype = compute_dtype
        key = jax.random.PRNGKey(0) if key is None else key
        kw, kb = jax.random.split(key)
        # deterministic synthetic init (module's own init is zeros — use
        # small random values so the kernel computes something non-trivial)
        self.weight = (0.1 * jax.random.normal(
            kw, (self.K, self.R, self.S, self.C))).astype(dtype)
        self.bias = (0.1 * jax.random.normal(
            kb, (self.K,))).astype(dtype) if bias else None

    def __call__(self, features, indices, spatial_shape, batch_size):
        H, W = spatial_shape
        out_f, out_i, P, Q = naive_submconv2d_1(
            features, indices, H, W, batch_size, self.weight, self.bias,
            (self.str_h, self.str_w), (self.pad_h, self.pad_w),
            (self.dil_h, self.dil_w), compute_dtype=self.compute_dtype)
        return out_f, out_i, [P, Q], batch_size


# ---------------------------------------------------------------------------
if __name__ == "__main__":
    key = jax.random.PRNGKey(0)
    k_mask, k_feat, k_param = jax.random.split(key, 3)

    batch_size, C, K = 2, 4, 8
    H, W = 16, 16
    kernel_size, stride, padding, dilation = 3, 1, 1, 1

    # build a deterministic sparse input (≈25% density)
    mask = jax.random.uniform(k_mask, (batch_size, H, W)) < 0.25
    bb, hh, ww = jnp.nonzero(mask)
    indices = jnp.stack([bb, hh, ww], axis=1).astype(jnp.int32)   # (N, 3)
    N = int(indices.shape[0])
    features = jax.random.normal(k_feat, (N, C), dtype=jnp.float32)

    conv = NaiveSubMConv2dPallas(C, K, kernel_size, stride=stride,
                                 padding=padding, dilation=dilation,
                                 bias=True, key=k_param)

    out_features, out_indices, out_spatial, out_bs = conv(
        features, indices, [H, W], batch_size)
    out_features = jax.block_until_ready(out_features)

    # reference: dense conv on the scattered-dense tensor, sampled at the
    # (unchanged) active output indices.  The kernel computes in bf16 with f32
    # accumulation, so pre-round features/weight to bf16 for an apples-to-apples
    # reference (remaining differences are only f32 accumulation order).
    feat_q = features.astype(jnp.bfloat16).astype(jnp.float32)
    w_q = conv.weight.astype(jnp.bfloat16).astype(jnp.float32)
    x_dense = jnp.zeros((batch_size, C, H, W), jnp.float32)
    x_dense = x_dense.at[indices[:, 0], :, indices[:, 1], indices[:, 2]].set(
        feat_q)
    w_oihw = jnp.transpose(w_q, (0, 3, 1, 2))   # (K, C, R, S)
    y_dense = jax.lax.conv_general_dilated(
        x_dense, w_oihw, window_strides=(stride, stride),
        padding=[(padding, padding), (padding, padding)],
        rhs_dilation=(dilation, dilation),
        dimension_numbers=("NCHW", "OIHW", "NCHW"),
        precision=jax.lax.Precision.HIGHEST)
    ref = (y_dense[indices[:, 0], :, indices[:, 1], indices[:, 2]]
           + conv.bias[None, :])

    assert out_features.shape == (N, K)
    assert out_indices.shape == (N, 3)
    assert out_spatial == [H, W]
    assert jnp.allclose(out_features, ref, atol=1e-2, rtol=1e-2)

    print("KERNEL_OK")
</pallas_src>

<mosaic_0001>
module attributes {stable_mosaic.version = 11 : i64} {
  func.func @_subm_gemm_kernel(%arg0: i32, %arg1: memref<152x36xbf16, #tpu.memory_space<vmem>>, %arg2: memref<36x128xbf16, #tpu.memory_space<vmem>>, %arg3: memref<1x128xf32, #tpu.memory_space<vmem>>, %arg4: memref<152x128xf32, #tpu.memory_space<vmem>>) attributes {dimension_semantics = [#tpu.dimension_semantics<parallel>], iteration_bounds = array<i64: 1>, scalar_prefetch = 0 : i64, scratch_operands = 0 : i64, tpu.core_type = #tpu.core_type<tc>, window_params = [{transform_indices = @transform_0, window_bounds = array<i64: 152, 36>}, {pipeline_mode = #tpu.pipeline_mode<synchronous>, transform_indices = @transform_1, window_bounds = array<i64: 36, 128>}, {pipeline_mode = #tpu.pipeline_mode<synchronous>, transform_indices = @transform_2, window_bounds = array<i64: 1, 128>}, {transform_indices = @transform_3, window_bounds = array<i64: 152, 128>}]} {
    %c0 = arith.constant 0 : index
    %c0_0 = arith.constant 0 : index
    %0 = vector.load %arg1[%c0, %c0_0] : memref<152x36xbf16, #tpu.memory_space<vmem>>, vector<152x36xbf16>
    %c0_1 = arith.constant 0 : index
    %c0_2 = arith.constant 0 : index
    %1 = vector.load %arg2[%c0_1, %c0_2] : memref<36x128xbf16, #tpu.memory_space<vmem>>, vector<36x128xbf16>
    %cst = arith.constant dense<0.000000e+00> : vector<152x128xf32>
    %2 = tpu.matmul %0, %1, %cst {dimension_numbers = #tpu.dot_dimension_numbers<[1], [0], [0], [1], [0, 0, 1, 1], [], []>} : vector<152x36xbf16>, vector<36x128xbf16>, vector<152x128xf32> -> vector<152x128xf32>
    %c0_3 = arith.constant 0 : index
    %c0_4 = arith.constant 0 : index
    %3 = vector.load %arg3[%c0_3, %c0_4] : memref<1x128xf32, #tpu.memory_space<vmem>>, vector<1x128xf32>
    %4 = vector.broadcast %3 : vector<1x128xf32> to vector<152x128xf32>
    %5 = arith.addf %2, %4 : vector<152x128xf32>
    %c0_5 = arith.constant 0 : index
    %c0_6 = arith.constant 0 : index
    %6 = vector.load %arg4[%c0_5, %c0_6] : memref<152x128xf32, #tpu.memory_space<vmem>>, vector<152x128xf32>
    tpu.vector_store %arg4[%c0_5, %c0_6], %5 {strides = array<i32>} : memref<152x128xf32, #tpu.memory_space<vmem>>, vector<152x128xf32>,
    return
  }
  func.func @transform_0(%arg0: i32) -> (i32, i32) {
    %c0_i32 = arith.constant 0 : i32
    %c0_i32_0 = arith.constant 0 : i32
    return %arg0, %c0_i32 : i32, i32
  }
  func.func @transform_1(%arg0: i32) -> (i32, i32) {
    %c0_i32 = arith.constant 0 : i32
    %c0_i32_0 = arith.constant 0 : i32
    %c0_i32_1 = arith.constant 0 : i32
    return %c0_i32, %c0_i32_0 : i32, i32
  }
  func.func @transform_2(%arg0: i32) -> (i32, i32) {
    %c0_i32 = arith.constant 0 : i32
    %c0_i32_0 = arith.constant 0 : i32
    %c0_i32_1 = arith.constant 0 : i32
    return %c0_i32, %c0_i32_0 : i32, i32
  }
  func.func @transform_3(%arg0: i32) -> (i32, i32) {
    %c0_i32 = arith.constant 0 : i32
    %c0_i32_0 = arith.constant 0 : i32
    return %arg0, %c0_i32 : i32, i32
  }
}

</mosaic_0001>

<llo_original>
// kernel: tpu_custom_call.1
$region0: #{tpu_custom_call.1}
  #allocation0 [shape = 'u32[]', space=smem, size = 0x4, offset = 0x4, fixed_abs, tag = 'smem constant byte address 0x4 - core index']
  #allocation1 [shape = 'u32[72,128]{1,0:T(1,128)}', space=vmem, size = 0x9000, scoped, tag = 'internal scratch']
  %s0 = inlined_call_operand.vmem [shape: bf16[152,36], index: 0, kind: input, shape index: {}]
  %s1 = inlined_call_operand.vmem [shape: bf16[36,128], index: 1, kind: input, shape index: {}]
  %s2 = inlined_call_operand.vmem [shape: f32[1,128], index: 2, kind: input, shape index: {}]
  %s3 = inlined_call_operand.hbm [shape: f32[152,128], index: 3, kind: output, shape index: {}]
  %s4 = sld [smem:[#allocation0]]
  $region22: #{tpu_custom_call.1} parent=0
    _
  %s6 = ssub.s32 1, %s4
  %s7 = scalar_select 0, %s6, %s4
  $region1: #{tpu_custom_call.1} parent=0
    #allocation2 [shape = 'u8[77824]{0}', space=vmem, size = 0x13000, scoped, tag = 'output window, operand 0, single buffered']
    #allocation3 [shape = 's32[1]{0}', space=sflag, size = 0x4, scoped, tag = 'scoped memory for tpu_custom_call.1']
    %8 = vsyncpa [#allocation3], 0
    // Predicated region
    $region2: #{tpu_custom_call.1} parent=1 // pred_check
      _
    $region3: #{tpu_custom_call.1} parent=1 // pred_check_branch
      %10 = sbr.rel (0) target = $region5
    $region4: #{tpu_custom_call.1} parent=1 // pred_region
      _
    $region5: #{tpu_custom_call.1} parent=1 // pred_fallthru
      _
    // Predicated region
    $region6: #{tpu_custom_call.1} parent=1 // pred_check
      _
    $region7: #{tpu_custom_call.1} parent=1 // pred_check_branch
      %12 = sbr.rel (0) target = $region9
    $region8: #{tpu_custom_call.1} parent=1 // pred_region
      _
    $region9: #{tpu_custom_call.1} parent=1 // pred_fallthru
      _
    // Predicated region
    $region10: #{tpu_custom_call.1} parent=1 // pred_check
      _
    $region11: #{tpu_custom_call.1} parent=1 // pred_check_branch
      %14 = sbr.rel (0) target = $region13
    $region12: #{tpu_custom_call.1} parent=1 // pred_region
      _
    $region13: #{tpu_custom_call.1} parent=1 // pred_fallthru
      _
    %v16 = vld [vmem:[%s0] sm:$0xf]
    %v17 = vld [vmem:[%s0 + $0x4] sm:$0xf]
    %v18 = vld [vmem:[%s0 + $0x8] sm:$0xf]
    %v19 = vld [vmem:[%s0 + $0xc] sm:$0xf]
    %v20 = vld [vmem:[%s0 + $0x10] sm:$0xf]
    %v21 = vld [vmem:[%s0 + $0x14] sm:$0xf]
    %v22 = vld [vmem:[%s0 + $0x18] sm:$0xf]
    %v23 = vld [vmem:[%s0 + $0x1c] sm:$0xf]
    %v24 = vld [vmem:[%s0 + $0x20] sm:$0xf]
    %v25 = vld [vmem:[%s0 + $0x24] sm:$0xf]
    %v26 = vld [vmem:[%s0 + $0x28] sm:$0xf]
    %v27 = vld [vmem:[%s0 + $0x2c] sm:$0xf]
    %v28 = vld [vmem:[%s0 + $0x30] sm:$0xf]
    %v29 = vld [vmem:[%s0 + $0x34] sm:$0xf]
    %v30 = vld [vmem:[%s0 + $0x38] sm:$0xf]
    %v31 = vld [vmem:[%s0 + $0x3c] sm:$0xf]
    %v32 = vld [vmem:[%s0 + $0x40] sm:$0xf]
    %v33 = vld [vmem:[%s0 + $0x44] sm:$0xf]
    %v34 = vld [vmem:[%s0 + $0x48] sm:$0xf]
    %v35 = vld [vmem:[%s1] sm:$0xf]
    %v36 = vld [vmem:[%s1 + $0x4] sm:$0xf]
    %v37 = vld [vmem:[%s1 + $0x8] sm:$0xf]
    %v38 = vld [vmem:[%s1 + $0xc] sm:$0xf]
    %v39 = vld [vmem:[%s1 + $0x10] sm:$0x3]
    %v40 = vld [vmem:[%s2] sm:$0x1]
    %v42 = vperm.slane %v40, 0
    %v63 = vunpack.c.l.b16 %v16
    %v64 = vunpack.c.l.b16 %v17
    %v65 = vunpack.c.l.b16 %v18
    %v66 = vunpack.c.l.b16 %v19
    %v67 = vunpack.c.l.b16 %v20
    %v68 = vunpack.c.l.b16 %v21
    %v69 = vunpack.c.l.b16 %v22
    %v70 = vunpack.c.l.b16 %v23
    %v71 = vunpack.c.l.b16 %v24
    %v72 = vunpack.c.l.b16 %v25
    %v73 = vunpack.c.l.b16 %v26
    %v74 = vunpack.c.l.b16 %v27
    %v75 = vunpack.c.l.b16 %v28
    %v76 = vunpack.c.l.b16 %v29
    %v77 = vunpack.c.l.b16 %v30
    %v78 = vunpack.c.l.b16 %v31
    %v79 = vunpack.c.l.b16 %v32
    %v80 = vunpack.c.l.b16 %v33
    %v81 = vunpack.c.l.b16 %v34
    %v82 = vpack.c.b16 %v64, %v63
    %v83 = vpack.c.b16 %v66, %v65
    %v84 = vpack.c.b16 %v68, %v67
    %v85 = vpack.c.b16 %v70, %v69
    %v86 = vpack.c.b16 %v72, %v71
    %v87 = vpack.c.b16 %v74, %v73
    %v88 = vpack.c.b16 %v76, %v75
    %v89 = vpack.c.b16 %v78, %v77
    %v90 = vpack.c.b16 %v80, %v79
    %v91 = vpack.c.b16 %v81, %v81
    %v97 = vunpack.c.l.b16 %v35
    %v98 = vunpack.c.l.b16 %v36
    %v99 = vunpack.c.l.b16 %v37
    %v100 = vunpack.c.l.b16 %v38
    %v101 = vunpack.c.l.b16 %v39
    %v102 = vpack.c.b16 %v98, %v97
    %v103 = vpack.c.b16 %v100, %v99
    %v104 = vpack.c.b16 %v101, %v101
    %vm107 = vcmask 293888
    %v109 = vsel %vm107, %v82, 0
    %v112 = vsel %vm107, %v83, 0
    %v115 = vsel %vm107, %v84, 0
    %v118 = vsel %vm107, %v85, 0
    %v121 = vsel %vm107, %v86, 0
    %v124 = vsel %vm107, %v87, 0
    %v127 = vsel %vm107, %v88, 0
    %v130 = vsel %vm107, %v89, 0
    %v133 = vsel %vm107, %v90, 0
    %v136 = vsel %vm107, %v91, 0
    %vm138 = vcmask 1041408
    %v140 = vsel %vm138, %v104, 0
    %142 = vmatpush.bf16.msra.mxu0 0
    %143 = vmatpush.bf16.msra.mxu0 0
    %144 = vmatpush.bf16.msra.mxu0 0
    %145 = vmatpush.bf16.msra.mxu0 0
    %146 = vmatpush.bf16.msra.mxu0 0
    %147 = vmatpush.bf16.msra.mxu0 %v140
    %148 = vmatpush.bf16.msra.mxu0 %v103
    %149 = vmatpush.bf16.msra.mxu0 %v102
    %150 = vmatmul.bf16.gmra.mxu0 %v109
    %v151 = vpop.f32.mrf.mxu0
    %v152 = vadd.f32 %v42, %v151
    %v153 = vpop.f32.mrf.mxu0
    %v154 = vadd.f32 %v42, %v153
    %155 = vmatmul.bf16.gmra.mxu0 %v112
    %v156 = vpop.f32.mrf.mxu0
    %v157 = vadd.f32 %v42, %v156
    %v158 = vpop.f32.mrf.mxu0
    %v159 = vadd.f32 %v42, %v158
    %160 = vmatmul.bf16.gmra.mxu0 %v115
    %v161 = vpop.f32.mrf.mxu0
    %v162 = vadd.f32 %v42, %v161
    %v163 = vpop.f32.mrf.mxu0
    %v164 = vadd.f32 %v42, %v163
    %165 = vmatmul.bf16.gmra.mxu0 %v118
    %v166 = vpop.f32.mrf.mxu0
    %v167 = vadd.f32 %v42, %v166
    %v168 = vpop.f32.mrf.mxu0
    %v169 = vadd.f32 %v42, %v168
    %170 = vmatmul.bf16.gmra.mxu0 %v121
    %v171 = vpop.f32.mrf.mxu0
    %v172 = vadd.f32 %v42, %v171
    %v173 = vpop.f32.mrf.mxu0
    %v174 = vadd.f32 %v42, %v173
    %175 = vmatmul.bf16.gmra.mxu0 %v124
    %v176 = vpop.f32.mrf.mxu0
    %v177 = vadd.f32 %v42, %v176
    %v178 = vpop.f32.mrf.mxu0
    %v179 = vadd.f32 %v42, %v178
    %180 = vmatmul.bf16.gmra.mxu0 %v127
    %v181 = vpop.f32.mrf.mxu0
    %v182 = vadd.f32 %v42, %v181
    %v183 = vpop.f32.mrf.mxu0
    %v184 = vadd.f32 %v42, %v183
    %185 = vmatmul.bf16.gmra.mxu0 %v130
    %v186 = vpop.f32.mrf.mxu0
    %v187 = vadd.f32 %v42, %v186
    %v188 = vpop.f32.mrf.mxu0
    %v189 = vadd.f32 %v42, %v188
    %190 = vmatmul.bf16.gmra.mxu0 %v133
    %v191 = vpop.f32.mrf.mxu0
    %v192 = vadd.f32 %v42, %v191
    %v193 = vpop.f32.mrf.mxu0
    %v194 = vadd.f32 %v42, %v193
    %195 = vmatmul.bf16.gmra.mxu0 %v136
    %v196 = vpop.f32.mrf.mxu0
    %v197 = vadd.f32 %v42, %v196
    %v198 = vpop.f32.mrf.mxu0
    %199 = vdwg.mxu0
    %200 = vst [vmem:[#allocation2] sm:$0xff] %v152
    %201 = vst [vmem:[#allocation2 + $0x8] sm:$0xff] %v154
    %202 = vst [vmem:[#allocation2 + $0x10] sm:$0xff] %v157
    %203 = vst [vmem:[#allocation2 + $0x18] sm:$0xff] %v159
    %204 = vst [vmem:[#allocation2 + $0x20] sm:$0xff] %v162
    %205 = vst [vmem:[#allocation2 + $0x28] sm:$0xff] %v164
    %206 = vst [vmem:[#allocation2 + $0x30] sm:$0xff] %v167
    %207 = vst [vmem:[#allocation2 + $0x38] sm:$0xff] %v169
    %208 = vst [vmem:[#allocation2 + $0x40] sm:$0xff] %v172
    %209 = vst [vmem:[#allocation2 + $0x48] sm:$0xff] %v174
    %210 = vst [vmem:[#allocation2 + $0x50] sm:$0xff] %v177
    %211 = vst [vmem:[#allocation2 + $0x58] sm:$0xff] %v179
    %212 = vst [vmem:[#allocation2 + $0x60] sm:$0xff] %v182
    %213 = vst [vmem:[#allocation2 + $0x68] sm:$0xff] %v184
    %214 = vst [vmem:[#allocation2 + $0x70] sm:$0xff] %v187
    %215 = vst [vmem:[#allocation2 + $0x78] sm:$0xff] %v189
    %216 = vst [vmem:[#allocation2 + $0x80] sm:$0xff] %v192
    %217 = vst [vmem:[#allocation2 + $0x88] sm:$0xff] %v194
    %218 = vst [vmem:[#allocation2 + $0x90] sm:$0xff] %v197
    // Predicated region
    $region14: #{tpu_custom_call.1} parent=1 // pred_check
      _
    $region15: #{tpu_custom_call.1} parent=1 // pred_check_branch
      %220 = sbr.rel (0) target = $region17
    $region16: #{tpu_custom_call.1} parent=1 // pred_region
      %222 = vsyncadd [#allocation3], 0
      %s223 = sshll.u32 [#allocation2], 4
      %s224 = int_to_ptr.vmem [resolvable:$true] %s223
      %s225 = sshll.u32 %s3, 4
      %s226 = int_to_ptr.hbm [resolvable:$true] %s225
      %231 = dma.vmem_to_hbm [thread:$0]  %s224, 2432, %s226, [#allocation3], 128, 128, 8
    $region17: #{tpu_custom_call.1} parent=1 // pred_fallthru
      _
    // Predicated region
    $region18: #{tpu_custom_call.1} parent=1 // pred_check
      _
    $region19: #{tpu_custom_call.1} parent=1 // pred_check_branch
      %233 = sbr.rel (0) target = $region21
    $region20: #{tpu_custom_call.1} parent=1 // pred_region
      %235 = dma.done [#allocation3], 2432
    $region21: #{tpu_custom_call.1} parent=1 // pred_fallthru
      _
    %236 = vsyncpa [#allocation3], 1

</llo_original>
